<compile_context>
chip_gen: v5e
topology: v5e:2x2
jax: 0.10.0
libtpu: 0.0.40
codegen_flags: <defaults>
</compile_context>

<pallas_src>
import functools

import jax
import jax.numpy as jnp
from jax import lax
from jax.experimental import pallas as pl
from jax.experimental.pallas import tpu as pltpu

Nvoids_fid_all = {30: 1463.39, 40: 786.59, 50: 315.81}
RMIN = 40
Nvoids_fid = Nvoids_fid_all[RMIN]

_SMALL_B_FALLBACK = 2048     # below this, pallas_call launch overhead dominates
_DEFAULT_BLOCK_ROWS = 2048   # packed rows per block (= 8192 original rows)


def _loss_kernel(pred_ref, targ_ref, l_ref, n_ref, out_ref, *, inv_nfid, bp_valid, tbp):
    """One batch tile of lane-packed rows.

    pred_ref/targ_ref : (TBp, 128)   4 original D=32 rows packed per packed-row
    l_ref             : (128, 128)   block_diag(L,L,L,L), bf16, resident
    n_ref             : (TBp, 4)     per-original-row void counts
    out_ref           : (1, 128)     this block's lane-wise partial sums
    """
    i = pl.program_id(0)

    # Subtract in f32 (avoid cancellation), feed the MXU in bf16, accumulate in f32.
    delta = pred_ref[...].astype(jnp.float32) - targ_ref[...].astype(jnp.float32)
    y = jnp.dot(delta.astype(jnp.bfloat16), l_ref[...],
                preferred_element_type=jnp.float32)                  # (TBp, 128)
    z = y * y                                                        # (TBp, 128)

    # Expand the per-original-row weight n across its 32-lane segment (lane-dense).
    n = n_ref[...].astype(jnp.float32)                               # (TBp, 4)
    lane = lax.broadcasted_iota(jnp.int32, z.shape, 1)               # (TBp, 128)
    w = jnp.where(lane < 32, n[:, 0:1],
        jnp.where(lane < 64, n[:, 1:2],
        jnp.where(lane < 96, n[:, 2:3], n[:, 3:4])))                 # (TBp, 128)
    contrib = z * w

    # Mask the ragged tail of the last block (out-of-range VMEM holds garbage).
    row = i * tbp + lax.broadcasted_iota(jnp.int32, z.shape, 0)
    contrib = jnp.where(row < bp_valid, contrib, 0.0)

    # Sublane reduce only; cross-lane / cross-block reduction happens in the wrapper.
    out_ref[...] = jnp.sum(contrib, axis=0, keepdims=True) * inv_nfid


def _loss_pallas_sum(pred, targ, n, lblock_bf16, *, max_block_rows=_DEFAULT_BLOCK_ROWS):
    """Returns sum_b (n_b / Nvoids_fid) * delta_b^T covinv delta_b (no /B yet)."""
    B, D = pred.shape
    assert D == 32 and B % 4 == 0
    Bp = B // 4

    # Contiguous, layout-preserving reshapes (no data movement).
    pred_p = pred.reshape(Bp, 4 * D)
    targ_p = targ.reshape(Bp, 4 * D)
    n_p = n.reshape(Bp, 4)

    if Bp <= max_block_rows:
        tbp = Bp                         # single block == full array extent
    else:
        tbp = max((max_block_rows // 8) * 8, 8)   # multiple of 8, ragged tail masked
    g = pl.cdiv(Bp, tbp)

    kernel = functools.partial(
        _loss_kernel,
        inv_nfid=float(1.0 / Nvoids_fid),
        bp_valid=Bp,
        tbp=tbp,
    )

    partials = pl.pallas_call(
        kernel,
        out_shape=jax.ShapeDtypeStruct((1, g * 128), jnp.float32),
        grid_spec=pltpu.PrefetchScalarGridSpec(
            num_scalar_prefetch=0,
            grid=(g,),
            in_specs=[
                pl.BlockSpec((tbp, 4 * D), lambda i: (i, 0)),   # pred (packed)
                pl.BlockSpec((tbp, 4 * D), lambda i: (i, 0)),   # targ (packed)
                pl.BlockSpec((4 * D, 4 * D), lambda i: (0, 0)), # block-diag L (resident)
                pl.BlockSpec((tbp, 4), lambda i: (i, 0)),       # n (packed)
            ],
            out_specs=pl.BlockSpec((1, 128), lambda i: (0, i)), # per-block 128-lane slab
        ),
        compiler_params=pltpu.CompilerParams(
            dimension_semantics=("parallel",),   # independent partial sums -> 2 TCs on v7x
        ),
    )(pred_p, targ_p, lblock_bf16, n_p)

    return jnp.sum(partials)


def make_loss_fn(covinv):
    """Factory: factor covinv once (it is fixed), return loss(pred, targ, n)."""
    covinv_f32 = jnp.asarray(covinv, dtype=jnp.float32)
    D = covinv_f32.shape[0]
    assert covinv_f32.shape == (32, 32), "kernel is specialized for D=32"

    # covinv is SPD (inverse covariance) => covinv = L @ L.T.
    # TODO(synk): add a small diagonal jitter / validation if covinv can be near-singular.
    L = jnp.linalg.cholesky(covinv_f32)                         # (32, 32)
    lblock = jnp.zeros((4 * D, 4 * D), jnp.float32)
    for s in range(4):
        lblock = lblock.at[s * D:(s + 1) * D, s * D:(s + 1) * D].set(L)
    lblock_bf16 = lblock.astype(jnp.bfloat16)                   # MXU is bf16-native

    def loss(pred, targ, n, *, force_pallas=False, max_block_rows=_DEFAULT_BLOCK_ROWS):
        B, Din = pred.shape
        assert Din == D
        use_pallas = (force_pallas or B >= _SMALL_B_FALLBACK) and (B % 4 == 0)
        if not use_pallas:
            # Tiny batches are pure launch overhead for a standalone kernel, and
            # B % 4 != 0 breaks the 4-way lane packing: use the fused XLA expression.
            delta = (pred - targ).astype(jnp.float32)
            x = jnp.einsum('bi,ij,bj->b', delta, covinv_f32, delta)
            return jnp.mean((n.astype(jnp.float32) / Nvoids_fid) * x)
        total = _loss_pallas_sum(pred, targ, n, lblock_bf16,
                                 max_block_rows=max_block_rows)
        return total / B   # mean over the original batch size

    return loss


if __name__ == "__main__":
    D = 32
    key = jax.random.PRNGKey(0)
    (k_pred, k_targ, k_n, k_cov,
     k_pred2, k_targ2, k_n2) = jax.random.split(key, 7)

    # Deterministic synthetic inverse covariance: symmetric positive-definite.
    A = jax.random.normal(k_cov, (D, D), dtype=jnp.float32)
    covinv = (A @ A.T) / D + jnp.eye(D, dtype=jnp.float32)

    loss_fn = make_loss_fn(covinv)

    def loss_ref(pred, targ, n):
        delta = pred - targ
        x = jnp.einsum('bi,ij,bj->b', delta, covinv, delta)
        return jnp.mean((n / Nvoids_fid) * x)

    # Test 1: small batch, force the Pallas path (single block, no raggedness).
    B = 8
    pred = jax.random.normal(k_pred, (B, D), dtype=jnp.float32)
    targ = jax.random.normal(k_targ, (B, D), dtype=jnp.float32)
    n = jax.random.uniform(k_n, (B,), minval=100.0, maxval=1000.0, dtype=jnp.float32)
    out = jax.block_until_ready(loss_fn(pred, targ, n, force_pallas=True))
    ref = jax.block_until_ready(loss_ref(pred, targ, n))
    # bf16 MXU path: ~1% relative error expected on a training loss.
    assert jnp.allclose(out, ref, rtol=3e-2, atol=1e-3), (out, ref)

    # Test 2: multi-block grid with a ragged (masked) tail block.
    B2 = 72   # Bp = 18 packed rows, block = 8 -> grid 3, last block masked
    pred2 = jax.random.normal(k_pred2, (B2, D), dtype=jnp.float32)
    targ2 = jax.random.normal(k_targ2, (B2, D), dtype=jnp.float32)
    n2 = jax.random.uniform(k_n2, (B2,), minval=100.0, maxval=1000.0, dtype=jnp.float32)
    out2 = jax.block_until_ready(loss_fn(pred2, targ2, n2, force_pallas=True,
                                         max_block_rows=8))
    ref2 = jax.block_until_ready(loss_ref(pred2, targ2, n2))
    assert jnp.allclose(out2, ref2, rtol=3e-2, atol=1e-3), (out2, ref2)

    print("KERNEL_OK")
</pallas_src>

<mosaic_0001>
module attributes {stable_mosaic.version = 11 : i64} {
  func.func @_loss_kernel(%arg0: i32, %arg1: memref<2x128xf32, #tpu.memory_space<vmem>>, %arg2: memref<2x128xf32, #tpu.memory_space<vmem>>, %arg3: memref<128x128xbf16, #tpu.memory_space<vmem>>, %arg4: memref<2x4xf32, #tpu.memory_space<vmem>>, %arg5: memref<1x128xf32, #tpu.memory_space<vmem>>) attributes {dimension_semantics = [#tpu.dimension_semantics<parallel>], iteration_bounds = array<i64: 1>, scalar_prefetch = 0 : i64, scratch_operands = 0 : i64, tpu.core_type = #tpu.core_type<tc>, window_params = [{transform_indices = @transform_0, window_bounds = array<i64: 2, 128>}, {transform_indices = @transform_1, window_bounds = array<i64: 2, 128>}, {pipeline_mode = #tpu.pipeline_mode<synchronous>, transform_indices = @transform_2, window_bounds = array<i64: 128, 128>}, {transform_indices = @transform_3, window_bounds = array<i64: 2, 4>}, {transform_indices = @transform_4, window_bounds = array<i64: 1, 128>}]} {
    %c0 = arith.constant 0 : index
    %c0_0 = arith.constant 0 : index
    %0 = vector.load %arg1[%c0, %c0_0] : memref<2x128xf32, #tpu.memory_space<vmem>>, vector<2x128xf32>
    %c0_1 = arith.constant 0 : index
    %c0_2 = arith.constant 0 : index
    %1 = vector.load %arg2[%c0_1, %c0_2] : memref<2x128xf32, #tpu.memory_space<vmem>>, vector<2x128xf32>
    %2 = arith.subf %0, %1 : vector<2x128xf32>
    %3 = arith.truncf %2 : vector<2x128xf32> to vector<2x128xbf16>
    %c0_3 = arith.constant 0 : index
    %c0_4 = arith.constant 0 : index
    %4 = vector.load %arg3[%c0_3, %c0_4] : memref<128x128xbf16, #tpu.memory_space<vmem>>, vector<128x128xbf16>
    %cst = arith.constant dense<0.000000e+00> : vector<2x128xf32>
    %5 = tpu.matmul %3, %4, %cst {dimension_numbers = #tpu.dot_dimension_numbers<[1], [0], [0], [1], [0, 0, 1, 1], [], []>} : vector<2x128xbf16>, vector<128x128xbf16>, vector<2x128xf32> -> vector<2x128xf32>
    %6 = arith.mulf %5, %5 : vector<2x128xf32>
    %c0_5 = arith.constant 0 : index
    %c0_6 = arith.constant 0 : index
    %7 = vector.load %arg4[%c0_5, %c0_6] : memref<2x4xf32, #tpu.memory_space<vmem>>, vector<2x4xf32>
    %8 = tpu.iota {dimensions = array<i32: 1>} : vector<2x128xi32>
    %c32_i32 = arith.constant 32 : i32
    %9 = vector.broadcast %c32_i32 : i32 to vector<2x128xi32>
    %10 = arith.cmpi slt, %8, %9 : vector<2x128xi32>
    %11 = vector.extract_strided_slice %7 {offsets = [0, 0], sizes = [2, 1], strides = [1, 1]} : vector<2x4xf32> to vector<2x1xf32>
    %c64_i32 = arith.constant 64 : i32
    %12 = vector.broadcast %c64_i32 : i32 to vector<2x128xi32>
    %13 = arith.cmpi slt, %8, %12 : vector<2x128xi32>
    %14 = vector.extract_strided_slice %7 {offsets = [0, 1], sizes = [2, 1], strides = [1, 1]} : vector<2x4xf32> to vector<2x1xf32>
    %c96_i32 = arith.constant 96 : i32
    %15 = vector.broadcast %c96_i32 : i32 to vector<2x128xi32>
    %16 = arith.cmpi slt, %8, %15 : vector<2x128xi32>
    %17 = vector.extract_strided_slice %7 {offsets = [0, 2], sizes = [2, 1], strides = [1, 1]} : vector<2x4xf32> to vector<2x1xf32>
    %18 = vector.extract_strided_slice %7 {offsets = [0, 3], sizes = [2, 1], strides = [1, 1]} : vector<2x4xf32> to vector<2x1xf32>
    %19 = vector.shape_cast %17 : vector<2x1xf32> to vector<2x1xf32>
    %20 = vector.broadcast %19 : vector<2x1xf32> to vector<2x128xf32>
    %21 = vector.shape_cast %18 : vector<2x1xf32> to vector<2x1xf32>
    %22 = vector.broadcast %21 : vector<2x1xf32> to vector<2x128xf32>
    %23 = arith.select %16, %20, %22 : vector<2x128xi1>, vector<2x128xf32>
    %24 = vector.shape_cast %14 : vector<2x1xf32> to vector<2x1xf32>
    %25 = vector.broadcast %24 : vector<2x1xf32> to vector<2x128xf32>
    %26 = arith.select %13, %25, %23 : vector<2x128xi1>, vector<2x128xf32>
    %27 = vector.shape_cast %11 : vector<2x1xf32> to vector<2x1xf32>
    %28 = vector.broadcast %27 : vector<2x1xf32> to vector<2x128xf32>
    %29 = arith.select %10, %28, %26 : vector<2x128xi1>, vector<2x128xf32>
    %30 = arith.mulf %6, %29 : vector<2x128xf32>
    %c2_i32 = arith.constant 2 : i32
    %31 = arith.muli %arg0, %c2_i32 : i32
    %32 = tpu.iota {dimensions = array<i32: 0>} : vector<2x128xi32>
    %33 = vector.broadcast %31 : i32 to vector<2x128xi32>
    %34 = arith.addi %33, %32 : vector<2x128xi32>
    %c2_i32_7 = arith.constant 2 : i32
    %35 = vector.broadcast %c2_i32_7 : i32 to vector<2x128xi32>
    %36 = arith.cmpi slt, %34, %35 : vector<2x128xi32>
    %cst_8 = arith.constant 0.000000e+00 : f32
    %37 = vector.broadcast %cst_8 : f32 to vector<2x128xf32>
    %38 = arith.select %36, %30, %37 : vector<2x128xi1>, vector<2x128xf32>
    %cst_9 = arith.constant dense<0.000000e+00> : vector<128xf32>
    %39 = vector.multi_reduction <add>, %38, %cst_9 [0] : vector<2x128xf32> to vector<128xf32>
    %40 = vector.shape_cast %39 : vector<128xf32> to vector<1x128xf32>
    %cst_10 = arith.constant 0.00127131038 : f32
    %41 = vector.broadcast %cst_10 : f32 to vector<1x128xf32>
    %42 = arith.mulf %40, %41 : vector<1x128xf32>
    %c0_11 = arith.constant 0 : index
    %c0_12 = arith.constant 0 : index
    %43 = vector.load %arg5[%c0_11, %c0_12] : memref<1x128xf32, #tpu.memory_space<vmem>>, vector<1x128xf32>
    tpu.vector_store %arg5[%c0_11, %c0_12], %42 {strides = array<i32>} : memref<1x128xf32, #tpu.memory_space<vmem>>, vector<1x128xf32>,
    return
  }
  func.func @transform_0(%arg0: i32) -> (i32, i32) {
    %c0_i32 = arith.constant 0 : i32
    %c0_i32_0 = arith.constant 0 : i32
    return %arg0, %c0_i32 : i32, i32
  }
  func.func @transform_1(%arg0: i32) -> (i32, i32) {
    %c0_i32 = arith.constant 0 : i32
    %c0_i32_0 = arith.constant 0 : i32
    return %arg0, %c0_i32 : i32, i32
  }
  func.func @transform_2(%arg0: i32) -> (i32, i32) {
    %c0_i32 = arith.constant 0 : i32
    %c0_i32_0 = arith.constant 0 : i32
    %c0_i32_1 = arith.constant 0 : i32
    return %c0_i32, %c0_i32_0 : i32, i32
  }
  func.func @transform_3(%arg0: i32) -> (i32, i32) {
    %c0_i32 = arith.constant 0 : i32
    %c0_i32_0 = arith.constant 0 : i32
    return %arg0, %c0_i32 : i32, i32
  }
  func.func @transform_4(%arg0: i32) -> (i32, i32) {
    %c0_i32 = arith.constant 0 : i32
    %c0_i32_0 = arith.constant 0 : i32
    return %c0_i32, %arg0 : i32, i32
  }
}

</mosaic_0001>

<llo_original>
// kernel: tpu_custom_call.1
$region0: #{tpu_custom_call.1}
  #allocation0 [shape = 'u32[]', space=smem, size = 0x4, offset = 0x4, fixed_abs, tag = 'smem constant byte address 0x4 - core index']
  #allocation1 [shape = 'u32[72,128]{1,0:T(1,128)}', space=vmem, size = 0x9000, scoped, tag = 'internal scratch']
  %s0 = inlined_call_operand.hbm [shape: f32[2,128], index: 0, kind: input, shape index: {}]
  %s1 = inlined_call_operand.hbm [shape: f32[2,128], index: 1, kind: input, shape index: {}]
  %s2 = inlined_call_operand.hbm [shape: bf16[128,128], index: 2, kind: input, shape index: {}]
  %s3 = inlined_call_operand.vmem [shape: f32[2,4], index: 3, kind: input, shape index: {}]
  %s4 = inlined_call_operand.hbm [shape: f32[1,128], index: 4, kind: output, shape index: {}]
  %s5 = sld [smem:[#allocation0]]
  $region38: #{tpu_custom_call.1} parent=0
    _
  %s7 = ssub.s32 1, %s5
  %s8 = scalar_select 0, %s7, %s5
  $region1: #{tpu_custom_call.1} parent=0
    #allocation2 [shape = 'u8[1024]{0}', space=vmem, size = 0x400, scoped, tag = 'input window, operand 0, single buffered']
    #allocation3 [shape = 's32[1]{0}', space=sflag, size = 0x4, scoped, tag = 'scoped memory for tpu_custom_call.1']
    #allocation4 [shape = 's32[1]{0}', space=sflag, size = 0x4, scoped, tag = 'scoped memory for tpu_custom_call.1']
    #allocation5 [shape = 'u8[1024]{0}', space=vmem, size = 0x400, scoped, tag = 'input window, operand 1, single buffered']
    #allocation6 [shape = 's32[1]{0}', space=sflag, size = 0x4, scoped, tag = 'scoped memory for tpu_custom_call.1']
    #allocation7 [shape = 'u8[32768]{0}', space=vmem, size = 0x8000, scoped, tag = 'input window, operand 2, single buffered']
    #allocation8 [shape = 'u8[512]{0}', space=vmem, size = 0x400, scoped, tag = 'output window, operand 0, single buffered']
    %9 = vsyncpa [#allocation3], 0
    %10 = vsyncpa [#allocation6], 0
    %11 = vsyncpa [#allocation4], 0
    // Predicated region
    $region2: #{tpu_custom_call.1} parent=1 // pred_check
      _
    $region3: #{tpu_custom_call.1} parent=1 // pred_check_branch
      %13 = sbr.rel (0) target = $region5
    $region4: #{tpu_custom_call.1} parent=1 // pred_region
      %15 = vsyncadd [#allocation3], 0
      %s17 = sshll.u32 %s0, 4
      %s18 = int_to_ptr.hbm [resolvable:$true] %s17
      %s19 = sshll.u32 [#allocation2], 4
      %s20 = int_to_ptr.vmem [resolvable:$true] %s19
      %22 = dma.hbm_to_vmem [thread:$0]  %s18, 32, %s20, [#allocation3]
    $region5: #{tpu_custom_call.1} parent=1 // pred_fallthru
      _
    // Predicated region
    $region6: #{tpu_custom_call.1} parent=1 // pred_check
      _
    $region7: #{tpu_custom_call.1} parent=1 // pred_check_branch
      %24 = sbr.rel (0) target = $region9
    $region8: #{tpu_custom_call.1} parent=1 // pred_region
      %26 = vsyncadd [#allocation6], 0
      %s28 = sshll.u32 %s1, 4
      %s29 = int_to_ptr.hbm [resolvable:$true] %s28
      %s30 = sshll.u32 [#allocation5], 4
      %s31 = int_to_ptr.vmem [resolvable:$true] %s30
      %33 = dma.hbm_to_vmem [thread:$0]  %s29, 32, %s31, [#allocation6]
    $region9: #{tpu_custom_call.1} parent=1 // pred_fallthru
      _
    // Predicated region
    $region10: #{tpu_custom_call.1} parent=1 // pred_check
      _
    $region11: #{tpu_custom_call.1} parent=1 // pred_check_branch
      %35 = sbr.rel (0) target = $region13
    $region12: #{tpu_custom_call.1} parent=1 // pred_region
      %37 = vsyncadd [#allocation6], 0
      %s38 = sshll.u32 %s2, 4
      %s39 = int_to_ptr.hbm [resolvable:$true] %s38
      %s40 = sshll.u32 [#allocation7], 4
      %s41 = int_to_ptr.vmem [resolvable:$true] %s40
      %46 = dma.hbm_to_vmem [thread:$0]  %s39, 1024, %s41, [#allocation6], 64, 64, 4
    $region13: #{tpu_custom_call.1} parent=1 // pred_fallthru
      _
    // Predicated region
    $region14: #{tpu_custom_call.1} parent=1 // pred_check
      _
    $region15: #{tpu_custom_call.1} parent=1 // pred_check_branch
      %48 = sbr.rel (0) target = $region17
    $region16: #{tpu_custom_call.1} parent=1 // pred_region
      _
    $region17: #{tpu_custom_call.1} parent=1 // pred_fallthru
      _
    // Predicated region
    $region18: #{tpu_custom_call.1} parent=1 // pred_check
      _
    $region19: #{tpu_custom_call.1} parent=1 // pred_check_branch
      %50 = sbr.rel (0) target = $region21
    $region20: #{tpu_custom_call.1} parent=1 // pred_region
      %52 = dma.done [#allocation3], 32
    $region21: #{tpu_custom_call.1} parent=1 // pred_fallthru
      _
    // Predicated region
    $region22: #{tpu_custom_call.1} parent=1 // pred_check
      _
    $region23: #{tpu_custom_call.1} parent=1 // pred_check_branch
      %54 = sbr.rel (0) target = $region25
    $region24: #{tpu_custom_call.1} parent=1 // pred_region
      %56 = dma.done [#allocation6], 32
    $region25: #{tpu_custom_call.1} parent=1 // pred_fallthru
      _
    // Predicated region
    $region26: #{tpu_custom_call.1} parent=1 // pred_check
      _
    $region27: #{tpu_custom_call.1} parent=1 // pred_check_branch
      %58 = sbr.rel (0) target = $region29
    $region28: #{tpu_custom_call.1} parent=1 // pred_region
      %60 = dma.done [#allocation6], 1024
    $region29: #{tpu_custom_call.1} parent=1 // pred_fallthru
      _
    %v61 = vld [vmem:[#allocation2] sm:$0x3]
    %v62 = vld [vmem:[#allocation5] sm:$0x3]
    %v63 = vsub.f32 %v61, %v62
    %v64 = vpack.c.bf16 %v63, %v63
    %v65 = vld [vmem:[#allocation7] sm:$0xf]
    %v66 = vld [vmem:[#allocation7 + $0x4] sm:$0xf]
    %v67 = vld [vmem:[#allocation7 + $0x8] sm:$0xf]
    %v68 = vld [vmem:[#allocation7 + $0xc] sm:$0xf]
    %v69 = vld [vmem:[#allocation7 + $0x10] sm:$0xf]
    %v70 = vld [vmem:[#allocation7 + $0x14] sm:$0xf]
    %v71 = vld [vmem:[#allocation7 + $0x18] sm:$0xf]
    %v72 = vld [vmem:[#allocation7 + $0x1c] sm:$0xf]
    %v73 = vld [vmem:[#allocation7 + $0x20] sm:$0xf]
    %v74 = vld [vmem:[#allocation7 + $0x24] sm:$0xf]
    %v75 = vld [vmem:[#allocation7 + $0x28] sm:$0xf]
    %v76 = vld [vmem:[#allocation7 + $0x2c] sm:$0xf]
    %v77 = vld [vmem:[#allocation7 + $0x30] sm:$0xf]
    %v78 = vld [vmem:[#allocation7 + $0x34] sm:$0xf]
    %v79 = vld [vmem:[#allocation7 + $0x38] sm:$0xf]
    %v80 = vld [vmem:[#allocation7 + $0x3c] sm:$0xf]
    %v97 = vunpack.c.l.b16 %v65
    %v98 = vunpack.c.l.b16 %v66
    %v99 = vunpack.c.l.b16 %v67
    %v100 = vunpack.c.l.b16 %v68
    %v101 = vunpack.c.l.b16 %v69
    %v102 = vunpack.c.l.b16 %v70
    %v103 = vunpack.c.l.b16 %v71
    %v104 = vunpack.c.l.b16 %v72
    %v105 = vunpack.c.l.b16 %v73
    %v106 = vunpack.c.l.b16 %v74
    %v107 = vunpack.c.l.b16 %v75
    %v108 = vunpack.c.l.b16 %v76
    %v109 = vunpack.c.l.b16 %v77
    %v110 = vunpack.c.l.b16 %v78
    %v111 = vunpack.c.l.b16 %v79
    %v112 = vunpack.c.l.b16 %v80
    %v113 = vpack.c.b16 %v98, %v97
    %v114 = vpack.c.b16 %v100, %v99
    %v115 = vpack.c.b16 %v102, %v101
    %v116 = vpack.c.b16 %v104, %v103
    %v117 = vpack.c.b16 %v106, %v105
    %v118 = vpack.c.b16 %v108, %v107
    %v119 = vpack.c.b16 %v110, %v109
    %v120 = vpack.c.b16 %v112, %v111
    %129 = vmatpush.bf16.msra.mxu0 %v120
    %130 = vmatpush.bf16.msra.mxu0 %v119
    %131 = vmatpush.bf16.msra.mxu0 %v118
    %132 = vmatpush.bf16.msra.mxu0 %v117
    %133 = vmatpush.bf16.msra.mxu0 %v116
    %134 = vmatpush.bf16.msra.mxu0 %v115
    %135 = vmatpush.bf16.msra.mxu0 %v114
    %136 = vmatpush.bf16.msra.mxu0 %v113
    %137 = vmatmul.bf16.gmra.mxu0 %v64
    %v138 = vpop.f32.mrf.mxu0
    %v139 = vadd.f32 0.0, %v138
    %v140 = vpop.f32.mrf.mxu0
    %141 = vdwg.mxu0
    %v142 = vmul.f32 %v139, %v139
    %v143 = vld [vmem:[%s3] sm:$0x3]
    %v144 = vlaneseq
    %v145 = vand.u32 %v144, 127
    %vm146 = vcmp.lt.s32.totalorder %v145, 32
    %vm147 = vcmp.lt.s32.totalorder %v145, 64
    %vm148 = vcmp.lt.s32.totalorder %v145, 96
    %150 = vset.pattern.permute.xlu0 2
    %151 = vperm.xlu0 %150, %v143
    %v152 = vpop.permute.xlu0 %151
    %154 = vset.pattern.permute.xlu0 3
    %155 = vperm.xlu0 %154, %v143
    %v156 = vpop.permute.xlu0 %155
    %v158 = vsel %vm148, %v152, %v156
    %159 = vset.pattern.permute.xlu0 1
    %160 = vperm.xlu0 %159, %v143
    %v161 = vpop.permute.xlu0 %160
    %v163 = vsel %vm147, %v161, %v158
    %164 = vset.pattern.permute.xlu0 0
    %165 = vperm.xlu0 %164, %v143
    %v166 = vpop.permute.xlu0 %165
    %v168 = vsel %vm146, %v166, %v163
    %v169 = vmul.f32 %v142, %v168
    %s170 = smul.u32 0, 2
    %v171 = vlaneseq
    %v172 = vshrl.u32 %v171, 7
    %v173 = vstv %s170
    %v174 = vadd.s32 %v173, %v172
    %vm175 = vcmp.lt.s32.totalorder %v174, 2
    %v176 = vsel %vm175, %v169, 0.0
    %vm177 = vcmask 1041408
    %v178 = vsel %vm177, %v176, 0.0
    %v179 = vrot.slane %v178, 4
    %v180 = vadd.f32 %v178, %v179
    %v181 = vrot.slane %v180, 2
    %v182 = vadd.f32 %v180, %v181
    %v183 = vrot.slane %v182, 1
    %v184 = vadd.f32 %v182, %v183
    %v185 = vmul.f32 %v184, 0.0012713104
    %186 = vst [vmem:[#allocation8] sm:$0x1] %v185
    // Predicated region
    $region30: #{tpu_custom_call.1} parent=1 // pred_check
      _
    $region31: #{tpu_custom_call.1} parent=1 // pred_check_branch
      %188 = sbr.rel (0) target = $region33
    $region32: #{tpu_custom_call.1} parent=1 // pred_region
      %190 = vsyncadd [#allocation4], 0
      %s192 = sshll.u32 [#allocation8], 4
      %s193 = int_to_ptr.vmem [resolvable:$true] %s192
      %s194 = sshll.u32 %s4, 4
      %s195 = int_to_ptr.hbm [resolvable:$true] %s194
      %197 = dma.vmem_to_hbm [thread:$0]  %s193, 16, %s195, [#allocation4]
    $region33: #{tpu_custom_call.1} parent=1 // pred_fallthru
      _
    // Predicated region
    $region34: #{tpu_custom_call.1} parent=1 // pred_check
      _
    $region35: #{tpu_custom_call.1} parent=1 // pred_check_branch
      %199 = sbr.rel (0) target = $region37
    $region36: #{tpu_custom_call.1} parent=1 // pred_region
      %201 = dma.done [#allocation4], 16
    $region37: #{tpu_custom_call.1} parent=1 // pred_fallthru
      _
    %202 = vsyncpa [#allocation3], 1
    %203 = vsyncpa [#allocation6], 1
    %204 = vsyncpa [#allocation4], 1

</llo_original>
